<compile_context>
chip_gen: v7x
topology: tpu7x:2x2x1
jax: 0.10.0
libtpu: 0.0.40
codegen_flags: <defaults>
</compile_context>

<pallas_src>
import math

import jax
import jax.numpy as jnp
import numpy as np
from jax.experimental import pallas as pl
from jax.experimental.pallas import tpu as pltpu


# ---------------------------------------------------------------------------
# Kernel: one fused matmul  y = f32( bf16(x) @ W_packed_bf16 )
# ---------------------------------------------------------------------------
def _lora_fused_kernel(x_ref, w_ref, o_ref):
    # x_ref: (tm, P*hs) f32    -- tile of packed state rows
    # w_ref: (P*hs, P*hs) bf16 -- block-diag(W_eff, ..., W_eff), resident across grid
    # o_ref: (tm, P*hs) f32    -- lane-dense output tile (aliases the input buffer)
    x = x_ref[...].astype(jnp.bfloat16)            # in-vreg cast, hidden under the MXU
    o_ref[...] = jnp.dot(x, w_ref[...], preferred_element_type=jnp.float32)


# ---------------------------------------------------------------------------
# Hoisted weight preparation (call once, cache the result keyed on (pack, params)).
# ---------------------------------------------------------------------------
def _choose_pack(n_rows, head_size):
    # SMALLEST pack whose packed lane width is a multiple of 128: keeps stores
    # unmasked while minimizing the zero-padded block-diagonal weight (perf review:
    # pack=2 for head_size=64 on all of v5e/v6e/v7x, not pack=4).
    for pack in (1, 2, 4, 8):
        if n_rows % pack == 0 and (pack * head_size) % 128 == 0:
            return pack
    return 1


def prepare_lora_weight(params, *, scaling, pack):
    """Fold LoRA into one effective weight and pack it block-diagonally (bf16)."""
    wt = params["encode_weight"].astype(jnp.float32).T        # (hs, hs)
    et = params["encode"].astype(jnp.float32).T               # (hs, r)
    dt = params["decode"].astype(jnp.float32).T               # (r, hs)
    w_eff = wt + jnp.float32(scaling) * (et @ dt)              # exact f32 fold
    if pack > 1:
        w_eff = jnp.kron(jnp.eye(pack, dtype=jnp.float32), w_eff)   # block-diagonal
    return w_eff.astype(jnp.bfloat16)                          # (pack*hs, pack*hs)


def _pick_tile(m_rows, cap=1024):
    # Small state (decode path): one grid step — per-step overhead dominates.
    if m_rows <= cap:
        return m_rows
    # Large M (prefill / batched): fixed tile + pl.cdiv grid; Pallas masks the ragged
    # last block, so m_rows need not divide tm.  cap=1024 keeps double-buffered f32
    # in+out tiles well under every chip's scoped-VMEM default and guarantees >= 2
    # parallel grid steps (both v7x TensorCores busy) for m_rows > 1024.
    return cap


# ---------------------------------------------------------------------------
# Forward
# ---------------------------------------------------------------------------
def _build_lora_call(m_rows, hs_packed, tm, weight_spec):
    grid = (pl.cdiv(m_rows, tm),)
    return pl.pallas_call(
        _lora_fused_kernel,
        out_shape=jax.ShapeDtypeStruct((m_rows, hs_packed), jnp.float32),
        grid_spec=pltpu.PrefetchScalarGridSpec(
            num_scalar_prefetch=0,
            grid=grid,
            in_specs=[
                pl.BlockSpec((tm, hs_packed), lambda i: (i, 0)),   # x row tiles
                weight_spec,                                        # resident weight
            ],
            out_specs=pl.BlockSpec((tm, hs_packed), lambda i: (i, 0)),
        ),
        compiler_params=pltpu.CompilerParams(
            dimension_semantics=("parallel",)),
        input_output_aliases={0: 0},                # out reuses x2's buffer (see NOTE)
        cost_estimate=pl.CostEstimate(
            flops=2 * m_rows * hs_packed * hs_packed,
            transcendentals=0,
            bytes_accessed=(m_rows * hs_packed * 4 * 2            # f32 in + f32 out
                            + hs_packed * hs_packed * 2),         # bf16 weight
        ),
    )


def encoder_decoder_lora_fwd(att_state, ffn_shift, packed_weight, *, pack, head_size):
    att_shift, x = att_state
    hs_packed = packed_weight.shape[0]                            # pack * head_size

    # Guard against a mismatched cached weight vs. state shape (perf-review concern).
    if hs_packed != pack * head_size:
        raise ValueError(f"packed_weight {packed_weight.shape} != pack*head_size "
                         f"({pack}*{head_size})")
    if x.shape[-1] != head_size or (x.size % hs_packed) != 0:
        raise ValueError(f"state shape {x.shape} incompatible with pack={pack}, "
                         f"head_size={head_size}")

    orig_shape = x.shape
    # Lane-dense repack: (..., hs) -> (M/pack, pack*hs), row-major (so each packed row
    # is `pack` consecutive original rows; block-diag weight applies W_eff to each).
    x2 = x.reshape(-1, hs_packed).astype(jnp.float32)
    m_rows = x2.shape[0]
    tm = _pick_tile(m_rows)

    w_spec_single = pl.BlockSpec((hs_packed, hs_packed), lambda i: (0, 0),
                                 pipeline_mode=pl.Buffered(1))    # no 2nd VMEM copy
    w_spec_default = pl.BlockSpec((hs_packed, hs_packed), lambda i: (0, 0))
    try:
        out = _build_lora_call(m_rows, hs_packed, tm, w_spec_single)(x2, packed_weight)
    except Exception:
        # Fallback: default double-buffering if pipeline_mode is rejected here.
        out = _build_lora_call(m_rows, hs_packed, tm, w_spec_default)(x2, packed_weight)

    x_out = out.reshape(orig_shape)                               # float32, state shape
    return (att_shift, x_out), ffn_shift


# ---------------------------------------------------------------------------
# Self-test
# ---------------------------------------------------------------------------
if __name__ == "__main__":
    key = jax.random.PRNGKey(0)
    head_size, r, alpha = 64, 8, 32
    B, H = 2, 2                                                   # state rows = B*H*hs
    emb = H * head_size
    scaling = alpha / r

    k1, k2, k3, k4, k5, k6 = jax.random.split(key, 6)

    # kaiming_uniform_(a=sqrt(5)) -> bound = 1/sqrt(fan_in)
    bound_w = 1.0 / math.sqrt(head_size)
    encode_weight = jax.random.uniform(k1, (head_size, head_size), jnp.float32,
                                       -bound_w, bound_w)
    encode = jax.random.uniform(k2, (r, head_size), jnp.float32, -bound_w, bound_w)
    # NOTE: the module inits `decode` to zeros; use small values here so the LoRA
    # branch is actually exercised numerically.
    decode = 0.02 * jax.random.normal(k3, (head_size, r), jnp.float32)
    params = dict(encode_weight=encode_weight, encode=encode, decode=decode)

    att_shift = jax.random.normal(k4, (B, 1, emb), jnp.float32)        # pass-through
    x_state = jax.random.normal(k5, (B, H, head_size, head_size), jnp.float32)
    ffn_shift = jax.random.normal(k6, (B, 1, emb), jnp.float32)        # pass-through

    # Hoisted (cacheable) weight prep — done once, not per forward call.
    n_rows = int(np.prod(x_state.shape[:-1]))                    # B*H*head_size = 256
    pack = _choose_pack(n_rows, head_size)                       # -> 2 (lane width 128)
    packed_weight = jax.block_until_ready(
        prepare_lora_weight(params, scaling=scaling, pack=pack))

    (att_shift_out, x_out), ffn_out = encoder_decoder_lora_fwd(
        (att_shift, x_state), ffn_shift, packed_weight,
        pack=pack, head_size=head_size)
    jax.block_until_ready(x_out)

    # Pure-JAX reference with the PyTorch bf16 casting discipline.  The kernel folds
    # the LoRA branch in f32 before a single bf16 matmul, so it is slightly MORE
    # accurate than this reference — the 2e-2 tolerance accepts that deviation.
    xb = x_state.astype(jnp.bfloat16)
    main = (xb @ encode_weight.astype(jnp.bfloat16).T).astype(jnp.bfloat16)
    low = (xb @ encode.astype(jnp.bfloat16).T).astype(jnp.bfloat16)
    lora = (low @ decode.astype(jnp.bfloat16).T).astype(jnp.bfloat16)
    ref = (main + jnp.bfloat16(scaling) * lora).astype(jnp.float32)

    np.testing.assert_allclose(np.asarray(x_out), np.asarray(ref),
                               rtol=2e-2, atol=2e-2)
    assert x_out.dtype == jnp.float32
    assert x_out.shape == x_state.shape
    assert att_shift_out.shape == att_shift.shape
    assert ffn_out.shape == ffn_shift.shape
    print("KERNEL_OK")
</pallas_src>

<mosaic_0001>
module attributes {stable_mosaic.version = 11 : i64} {
  func.func @_lora_fused_kernel(%arg0: i32, %arg1: memref<128x128xf32, #tpu.memory_space<vmem>>, %arg2: memref<128x128xbf16, #tpu.memory_space<vmem>>, %arg3: memref<128x128xf32, #tpu.memory_space<vmem>>) attributes {dimension_semantics = [#tpu.dimension_semantics<parallel>], iteration_bounds = array<i64: 1>, scalar_prefetch = 0 : i64, scratch_operands = 0 : i64, tpu.core_type = #tpu.core_type<tc>, window_params = [{transform_indices = @transform_0, window_bounds = array<i64: 128, 128>}, {pipeline_mode = #tpu.pipeline_mode<synchronous>, transform_indices = @transform_1, window_bounds = array<i64: 128, 128>}, {transform_indices = @transform_2, window_bounds = array<i64: 128, 128>}]} {
    %c0 = arith.constant 0 : index
    %c0_0 = arith.constant 0 : index
    %0 = vector.load %arg1[%c0, %c0_0] : memref<128x128xf32, #tpu.memory_space<vmem>>, vector<128x128xf32>
    %1 = arith.truncf %0 : vector<128x128xf32> to vector<128x128xbf16>
    %c0_1 = arith.constant 0 : index
    %c0_2 = arith.constant 0 : index
    %2 = vector.load %arg2[%c0_1, %c0_2] : memref<128x128xbf16, #tpu.memory_space<vmem>>, vector<128x128xbf16>
    %cst = arith.constant dense<0.000000e+00> : vector<128x128xf32>
    %3 = tpu.matmul %1, %2, %cst {dimension_numbers = #tpu.dot_dimension_numbers<[1], [0], [0], [1], [0, 0, 1, 1], [], []>} : vector<128x128xbf16>, vector<128x128xbf16>, vector<128x128xf32> -> vector<128x128xf32>
    %c0_3 = arith.constant 0 : index
    %c0_4 = arith.constant 0 : index
    %4 = vector.load %arg3[%c0_3, %c0_4] : memref<128x128xf32, #tpu.memory_space<vmem>>, vector<128x128xf32>
    tpu.vector_store %arg3[%c0_3, %c0_4], %3 {strides = array<i32>} : memref<128x128xf32, #tpu.memory_space<vmem>>, vector<128x128xf32>,
    return
  }
  func.func @transform_0(%arg0: i32) -> (i32, i32) {
    %c0_i32 = arith.constant 0 : i32
    %c0_i32_0 = arith.constant 0 : i32
    return %arg0, %c0_i32 : i32, i32
  }
  func.func @transform_1(%arg0: i32) -> (i32, i32) {
    %c0_i32 = arith.constant 0 : i32
    %c0_i32_0 = arith.constant 0 : i32
    %c0_i32_1 = arith.constant 0 : i32
    return %c0_i32, %c0_i32_0 : i32, i32
  }
  func.func @transform_2(%arg0: i32) -> (i32, i32) {
    %c0_i32 = arith.constant 0 : i32
    %c0_i32_0 = arith.constant 0 : i32
    return %arg0, %c0_i32 : i32, i32
  }
}

module attributes {stable_mosaic.version = 11 : i64} {
  func.func @_lora_fused_kernel(%arg0: i32, %arg1: memref<128x128xf32, #tpu.memory_space<vmem>>, %arg2: memref<128x128xbf16, #tpu.memory_space<vmem>>, %arg3: memref<128x128xf32, #tpu.memory_space<vmem>>) attributes {dimension_semantics = [#tpu.dimension_semantics<parallel>], iteration_bounds = array<i64: 1>, scalar_prefetch = 0 : i64, scratch_operands = 0 : i64, tpu.core_type = #tpu.core_type<tc>, window_params = [{transform_indices = @transform_0, window_bounds = array<i64: 128, 128>}, {pipeline_mode = #tpu.pipeline_mode<synchronous>, transform_indices = @transform_1, window_bounds = array<i64: 128, 128>}, {transform_indices = @transform_2, window_bounds = array<i64: 128, 128>}]} {
    %c0 = arith.constant 0 : index
    %c0_0 = arith.constant 0 : index
    %0 = vector.load %arg1[%c0, %c0_0] : memref<128x128xf32, #tpu.memory_space<vmem>>, vector<128x128xf32>
    %1 = arith.truncf %0 : vector<128x128xf32> to vector<128x128xbf16>
    %c0_1 = arith.constant 0 : index
    %c0_2 = arith.constant 0 : index
    %2 = vector.load %arg2[%c0_1, %c0_2] : memref<128x128xbf16, #tpu.memory_space<vmem>>, vector<128x128xbf16>
    %cst = arith.constant dense<0.000000e+00> : vector<128x128xf32>
    %3 = tpu.matmul %1, %2, %cst {dimension_numbers = #tpu.dot_dimension_numbers<[1], [0], [0], [1], [0, 0, 1, 1], [], []>} : vector<128x128xbf16>, vector<128x128xbf16>, vector<128x128xf32> -> vector<128x128xf32>
    %c0_3 = arith.constant 0 : index
    %c0_4 = arith.constant 0 : index
    %4 = vector.load %arg3[%c0_3, %c0_4] : memref<128x128xf32, #tpu.memory_space<vmem>>, vector<128x128xf32>
    tpu.vector_store %arg3[%c0_3, %c0_4], %3 {strides = array<i32>} : memref<128x128xf32, #tpu.memory_space<vmem>>, vector<128x128xf32>,
    return
  }
  func.func @transform_0(%arg0: i32) -> (i32, i32) {
    %c0_i32 = arith.constant 0 : i32
    %c0_i32_0 = arith.constant 0 : i32
    return %arg0, %c0_i32 : i32, i32
  }
  func.func @transform_1(%arg0: i32) -> (i32, i32) {
    %c0_i32 = arith.constant 0 : i32
    %c0_i32_0 = arith.constant 0 : i32
    %c0_i32_1 = arith.constant 0 : i32
    return %c0_i32, %c0_i32_0 : i32, i32
  }
  func.func @transform_2(%arg0: i32) -> (i32, i32) {
    %c0_i32 = arith.constant 0 : i32
    %c0_i32_0 = arith.constant 0 : i32
    return %arg0, %c0_i32 : i32, i32
  }
}

</mosaic_0001>

<llo_original>
// kernel: tpu_custom_call.1
$region0: #{tpu_custom_call.1}
  #allocation0 [shape = 'u32[]', space=smem, size = 0x4, offset = 0x4, fixed_abs, tag = 'smem constant byte address 0x4 - core index']
  #allocation1 [shape = 'u32[144,128]{1,0:T(1,128)}', space=vmem, size = 0x12000, scoped, tag = 'internal scratch']
  %s0 = inlined_call_operand.hbm [shape: f32[128,128], index: 0, kind: input, shape index: {}, may-alias: {0,2}]
  %s1 = inlined_call_operand.vmem [shape: bf16[128,128], index: 1, kind: input, shape index: {}]
  %s2 = inlined_call_operand.hbm [shape: f32[128,128], index: 2, kind: output, shape index: {}, may-alias: {0,2}]
  %s3 = sld [smem:[#allocation0]]
  $region22: #{tpu_custom_call.1} parent=0
    _
  %s5 = ssub.s32 1, %s3
  %s6 = scalar_select 0, %s5, %s3
  $region1: #{tpu_custom_call.1} parent=0
    #allocation2 [shape = 'u8[65536]{0}', space=vmem, size = 0x10000, scoped, tag = 'input window, operand 0, single buffered']
    #allocation3 [shape = 's32[1]{0}', space=sflag, size = 0x4, scoped, tag = 'scoped memory for tpu_custom_call.1']
    #allocation4 [shape = 's32[1]{0}', space=sflag, size = 0x4, scoped, tag = 'scoped memory for tpu_custom_call.1']
    #allocation5 [shape = 'u8[65536]{0}', space=vmem, size = 0x10000, scoped, tag = 'output window, operand 0, single buffered']
    %7 = vsyncpa [#allocation3], 0
    %8 = vsyncpa [#allocation4], 0
    // Predicated region
    $region2: #{tpu_custom_call.1} parent=1 // pred_check
      _
    $region3: #{tpu_custom_call.1} parent=1 // pred_check_branch
      %10 = sbr.rel (0) target = $region5
    $region4: #{tpu_custom_call.1} parent=1 // pred_region
      %s12 = ssub.s32 2048, 2048
      %13 = vsyncadd [#allocation3], %s12
      %s14 = sshll.u32 [#allocation2], 4
      %s15 = int_to_ptr.vmem [resolvable:$true] %s14
      %20 = dma.hbm_to_vmem [thread:$0]  %s0, 2048, %s15, [#allocation3], 128, 128, 8
    $region5: #{tpu_custom_call.1} parent=1 // pred_fallthru
      _
    // Predicated region
    $region6: #{tpu_custom_call.1} parent=1 // pred_check
      _
    $region7: #{tpu_custom_call.1} parent=1 // pred_check_branch
      %22 = sbr.rel (0) target = $region9
    $region8: #{tpu_custom_call.1} parent=1 // pred_region
      _
    $region9: #{tpu_custom_call.1} parent=1 // pred_fallthru
      _
    // Predicated region
    $region10: #{tpu_custom_call.1} parent=1 // pred_check
      _
    $region11: #{tpu_custom_call.1} parent=1 // pred_check_branch
      %24 = sbr.rel (0) target = $region13
    $region12: #{tpu_custom_call.1} parent=1 // pred_region
      %25 = dma.done [#allocation3], 2048
    $region13: #{tpu_custom_call.1} parent=1 // pred_fallthru
      _
    %v27 = vld [vmem:[#allocation2] sm:$0xff]
    %v28 = vld [vmem:[#allocation2 + $0x8] sm:$0xff]
    %v29 = vld [vmem:[#allocation2 + $0x10] sm:$0xff]
    %v30 = vld [vmem:[#allocation2 + $0x18] sm:$0xff]
    %v31 = vld [vmem:[#allocation2 + $0x20] sm:$0xff]
    %v32 = vld [vmem:[#allocation2 + $0x28] sm:$0xff]
    %v33 = vld [vmem:[#allocation2 + $0x30] sm:$0xff]
    %v34 = vld [vmem:[#allocation2 + $0x38] sm:$0xff]
    %v35 = vld [vmem:[#allocation2 + $0x40] sm:$0xff]
    %v36 = vld [vmem:[#allocation2 + $0x48] sm:$0xff]
    %v37 = vld [vmem:[#allocation2 + $0x50] sm:$0xff]
    %v38 = vld [vmem:[#allocation2 + $0x58] sm:$0xff]
    %v39 = vld [vmem:[#allocation2 + $0x60] sm:$0xff]
    %v40 = vld [vmem:[#allocation2 + $0x68] sm:$0xff]
    %v41 = vld [vmem:[#allocation2 + $0x70] sm:$0xff]
    %v42 = vld [vmem:[#allocation2 + $0x78] sm:$0xff]
    %v43 = vpack.c.bf16 %v28, %v27
    %v44 = vpack.c.bf16 %v30, %v29
    %v45 = vpack.c.bf16 %v32, %v31
    %v46 = vpack.c.bf16 %v34, %v33
    %v47 = vpack.c.bf16 %v36, %v35
    %v48 = vpack.c.bf16 %v38, %v37
    %v49 = vpack.c.bf16 %v40, %v39
    %v50 = vpack.c.bf16 %v42, %v41
    %v51 = vld [vmem:[%s1] sm:$0xf]
    %v52 = vld [vmem:[%s1 + $0x4] sm:$0xf]
    %v53 = vld [vmem:[%s1 + $0x8] sm:$0xf]
    %v54 = vld [vmem:[%s1 + $0xc] sm:$0xf]
    %v55 = vld [vmem:[%s1 + $0x10] sm:$0xf]
    %v56 = vld [vmem:[%s1 + $0x14] sm:$0xf]
    %v57 = vld [vmem:[%s1 + $0x18] sm:$0xf]
    %v58 = vld [vmem:[%s1 + $0x1c] sm:$0xf]
    %v59 = vld [vmem:[%s1 + $0x20] sm:$0xf]
    %v60 = vld [vmem:[%s1 + $0x24] sm:$0xf]
    %v61 = vld [vmem:[%s1 + $0x28] sm:$0xf]
    %v62 = vld [vmem:[%s1 + $0x2c] sm:$0xf]
    %v63 = vld [vmem:[%s1 + $0x30] sm:$0xf]
    %v64 = vld [vmem:[%s1 + $0x34] sm:$0xf]
    %v65 = vld [vmem:[%s1 + $0x38] sm:$0xf]
    %v66 = vld [vmem:[%s1 + $0x3c] sm:$0xf]
    %v83 = vunpack.c.l.b16 %v51
    %v84 = vunpack.c.l.b16 %v52
    %v85 = vunpack.c.l.b16 %v53
    %v86 = vunpack.c.l.b16 %v54
    %v87 = vunpack.c.l.b16 %v55
    %v88 = vunpack.c.l.b16 %v56
    %v89 = vunpack.c.l.b16 %v57
    %v90 = vunpack.c.l.b16 %v58
    %v91 = vunpack.c.l.b16 %v59
    %v92 = vunpack.c.l.b16 %v60
    %v93 = vunpack.c.l.b16 %v61
    %v94 = vunpack.c.l.b16 %v62
    %v95 = vunpack.c.l.b16 %v63
    %v96 = vunpack.c.l.b16 %v64
    %v97 = vunpack.c.l.b16 %v65
    %v98 = vunpack.c.l.b16 %v66
    %v99 = vpack.c.b16 %v84, %v83
    %v100 = vpack.c.b16 %v86, %v85
    %v101 = vpack.c.b16 %v88, %v87
    %v102 = vpack.c.b16 %v90, %v89
    %v103 = vpack.c.b16 %v92, %v91
    %v104 = vpack.c.b16 %v94, %v93
    %v105 = vpack.c.b16 %v96, %v95
    %v106 = vpack.c.b16 %v98, %v97
    %115 = vmatprep.subr.bf16.mxu0 0
    %116 = vmatpush1.bf16.msra.mxu0 %v99
    %117 = vmatprep.subr.bf16.mxu0 0
    %118 = vmatpush1.bf16.msra.mxu0 %v100
    %119 = vmatprep.subr.bf16.mxu0 0
    %120 = vmatpush1.bf16.msra.mxu0 %v101
    %121 = vmatprep.subr.bf16.mxu0 0
    %122 = vmatpush1.bf16.msra.mxu0 %v102
    %123 = vmatprep.subr.bf16.mxu0 0
    %124 = vmatpush1.bf16.msra.mxu0 %v103
    %125 = vmatprep.subr.bf16.mxu0 0
    %126 = vmatpush1.bf16.msra.mxu0 %v104
    %127 = vmatprep.subr.bf16.mxu0 0
    %128 = vmatpush1.bf16.msra.mxu0 %v105
    %129 = vmatprep.subr.bf16.mxu0 0
    %130 = vmatpush1.bf16.msra.mxu0 %v106
    %131 = vmatprep.subr.bf16.mxu0 0
    %132 = vmatpush1.bf16.msra.mxu0 0
    %133 = vmatprep.subr.bf16.mxu0 0
    %134 = vmatpush1.bf16.msra.mxu0 0
    %135 = vmatprep.subr.bf16.mxu0 0
    %136 = vmatpush1.bf16.msra.mxu0 0
    %137 = vmatprep.subr.bf16.mxu0 0
    %138 = vmatpush1.bf16.msra.mxu0 0
    %139 = vmatprep.subr.bf16.mxu0 0
    %140 = vmatpush1.bf16.msra.mxu0 0
    %141 = vmatprep.subr.bf16.mxu0 0
    %142 = vmatpush1.bf16.msra.mxu0 0
    %143 = vmatprep.subr.bf16.mxu0 0
    %144 = vmatpush1.bf16.msra.mxu0 0
    %145 = vmatprep.subr.bf16.mxu0 0
    %146 = vmatpush1.bf16.msra.mxu0 0
    %147 = vmatprep.mubr.bf16.mxu0 0
    %148 = vmatmul.mubr.bf16.gmra.mrb[0].mxu0 %v43
    %v149 = vpop.f32.mrb[0].mxu0
    %v150 = vadd.f32 0.0, %v149
    %v151 = vpop.f32.mrb[0].mxu0
    %v152 = vpop.f32.mrb[0].mxu0
    %v153 = vadd.f32 0.0, %v152
    %v154 = vpop.f32.mrb[0].mxu0
    %155 = vmatprep.mubr.bf16.mxu0 0
    %156 = vmatmul.mubr.bf16.gmra.mrb[0].mxu0 %v44
    %v157 = vpop.f32.mrb[0].mxu0
    %v158 = vadd.f32 0.0, %v157
    %v159 = vpop.f32.mrb[0].mxu0
    %v160 = vpop.f32.mrb[0].mxu0
    %v161 = vadd.f32 0.0, %v160
    %v162 = vpop.f32.mrb[0].mxu0
    %163 = vmatprep.mubr.bf16.mxu0 0
    %164 = vmatmul.mubr.bf16.gmra.mrb[0].mxu0 %v45
    %v165 = vpop.f32.mrb[0].mxu0
    %v166 = vadd.f32 0.0, %v165
    %v167 = vpop.f32.mrb[0].mxu0
    %v168 = vpop.f32.mrb[0].mxu0
    %v169 = vadd.f32 0.0, %v168
    %v170 = vpop.f32.mrb[0].mxu0
    %171 = vmatprep.mubr.bf16.mxu0 0
    %172 = vmatmul.mubr.bf16.gmra.mrb[0].mxu0 %v46
    %v173 = vpop.f32.mrb[0].mxu0
    %v174 = vadd.f32 0.0, %v173
    %v175 = vpop.f32.mrb[0].mxu0
    %v176 = vpop.f32.mrb[0].mxu0
    %v177 = vadd.f32 0.0, %v176
    %v178 = vpop.f32.mrb[0].mxu0
    %179 = vmatprep.mubr.bf16.mxu0 0
    %180 = vmatmul.mubr.bf16.gmra.mrb[0].mxu0 %v47
    %v181 = vpop.f32.mrb[0].mxu0
    %v182 = vadd.f32 0.0, %v181
    %v183 = vpop.f32.mrb[0].mxu0
    %v184 = vpop.f32.mrb[0].mxu0
    %v185 = vadd.f32 0.0, %v184
    %v186 = vpop.f32.mrb[0].mxu0
    %187 = vmatprep.mubr.bf16.mxu0 0
    %188 = vmatmul.mubr.bf16.gmra.mrb[0].mxu0 %v48
    %v189 = vpop.f32.mrb[0].mxu0
    %v190 = vadd.f32 0.0, %v189
    %v191 = vpop.f32.mrb[0].mxu0
    %v192 = vpop.f32.mrb[0].mxu0
    %v193 = vadd.f32 0.0, %v192
    %v194 = vpop.f32.mrb[0].mxu0
    %195 = vmatprep.mubr.bf16.mxu0 0
    %196 = vmatmul.mubr.bf16.gmra.mrb[0].mxu0 %v49
    %v197 = vpop.f32.mrb[0].mxu0
    %v198 = vadd.f32 0.0, %v197
    %v199 = vpop.f32.mrb[0].mxu0
    %v200 = vpop.f32.mrb[0].mxu0
    %v201 = vadd.f32 0.0, %v200
    %v202 = vpop.f32.mrb[0].mxu0
    %203 = vmatprep.mubr.bf16.mxu0 0
    %204 = vmatmul.mubr.bf16.gmra.mrb[0].mxu0 %v50
    %v205 = vpop.f32.mrb[0].mxu0
    %v206 = vadd.f32 0.0, %v205
    %v207 = vpop.f32.mrb[0].mxu0
    %v208 = vpop.f32.mrb[0].mxu0
    %v209 = vadd.f32 0.0, %v208
    %v210 = vpop.f32.mrb[0].mxu0
    %211 = vdwg.mxu0
    %212 = vst [vmem:[#allocation5] sm:$0xff] %v150
    %213 = vst [vmem:[#allocation5 + $0x8] sm:$0xff] %v153
    %214 = vst [vmem:[#allocation5 + $0x10] sm:$0xff] %v158
    %215 = vst [vmem:[#allocation5 + $0x18] sm:$0xff] %v161
    %216 = vst [vmem:[#allocation5 + $0x20] sm:$0xff] %v166
    %217 = vst [vmem:[#allocation5 + $0x28] sm:$0xff] %v169
    %218 = vst [vmem:[#allocation5 + $0x30] sm:$0xff] %v174
    %219 = vst [vmem:[#allocation5 + $0x38] sm:$0xff] %v177
    %220 = vst [vmem:[#allocation5 + $0x40] sm:$0xff] %v182
    %221 = vst [vmem:[#allocation5 + $0x48] sm:$0xff] %v185
    %222 = vst [vmem:[#allocation5 + $0x50] sm:$0xff] %v190
    %223 = vst [vmem:[#allocation5 + $0x58] sm:$0xff] %v193
    %224 = vst [vmem:[#allocation5 + $0x60] sm:$0xff] %v198
    %225 = vst [vmem:[#allocation5 + $0x68] sm:$0xff] %v201
    %226 = vst [vmem:[#allocation5 + $0x70] sm:$0xff] %v206
    %227 = vst [vmem:[#allocation5 + $0x78] sm:$0xff] %v209
    // Predicated region
    $region14: #{tpu_custom_call.1} parent=1 // pred_check
      _
    $region15: #{tpu_custom_call.1} parent=1 // pred_check_branch
      %229 = sbr.rel (0) target = $region17
    $region16: #{tpu_custom_call.1} parent=1 // pred_region
      %s231 = ssub.s32 2048, 2048
      %232 = vsyncadd [#allocation4], %s231
      %s233 = sshll.u32 [#allocation5], 4
      %s234 = int_to_ptr.vmem [resolvable:$true] %s233
      %239 = dma.vmem_to_hbm [thread:$0]  %s234, 2048, %s2, [#allocation4], 128, 128, 8
    $region17: #{tpu_custom_call.1} parent=1 // pred_fallthru
      _
    // Predicated region
    $region18: #{tpu_custom_call.1} parent=1 // pred_check
      _
    $region19: #{tpu_custom_call.1} parent=1 // pred_check_branch
      %241 = sbr.rel (0) target = $region21
    $region20: #{tpu_custom_call.1} parent=1 // pred_region
      %242 = dma.done [#allocation4], 2048
    $region21: #{tpu_custom_call.1} parent=1 // pred_fallthru
      _
    %243 = vsyncpa [#allocation3], 1
    %244 = vsyncpa [#allocation4], 1

// kernel: tpu_custom_call.1
$region0: #{tpu_custom_call.1}
  #allocation0 [shape = 'u32[]', space=smem, size = 0x4, offset = 0x4, fixed_abs, tag = 'smem constant byte address 0x4 - core index']
  #allocation1 [shape = 'u32[144,128]{1,0:T(1,128)}', space=vmem, size = 0x12000, scoped, tag = 'internal scratch']
  %s0 = inlined_call_operand.hbm [shape: f32[128,128], index: 0, kind: input, shape index: {}, may-alias: {0,2}]
  %s1 = inlined_call_operand.vmem [shape: bf16[128,128], index: 1, kind: input, shape index: {}]
  %s2 = inlined_call_operand.hbm [shape: f32[128,128], index: 2, kind: output, shape index: {}, may-alias: {0,2}]
  %s3 = sld [smem:[#allocation0]]
  $region22: #{tpu_custom_call.1} parent=0
    _
  %s5 = ssub.s32 1, %s3
  %s6 = scalar_select 0, %s5, %s3
  $region1: #{tpu_custom_call.1} parent=0
    #allocation2 [shape = 'u8[65536]{0}', space=vmem, size = 0x10000, scoped, tag = 'input window, operand 0, single buffered']
    #allocation3 [shape = 's32[1]{0}', space=sflag, size = 0x4, scoped, tag = 'scoped memory for tpu_custom_call.1']
    #allocation4 [shape = 's32[1]{0}', space=sflag, size = 0x4, scoped, tag = 'scoped memory for tpu_custom_call.1']
    #allocation5 [shape = 'u8[65536]{0}', space=vmem, size = 0x10000, scoped, tag = 'output window, operand 0, single buffered']
    %7 = vsyncpa [#allocation3], 0
    %8 = vsyncpa [#allocation4], 0
    // Predicated region
    $region2: #{tpu_custom_call.1} parent=1 // pred_check
      _
    $region3: #{tpu_custom_call.1} parent=1 // pred_check_branch
      %10 = sbr.rel (0) target = $region5
    $region4: #{tpu_custom_call.1} parent=1 // pred_region
      %s12 = ssub.s32 2048, 2048
      %13 = vsyncadd [#allocation3], %s12
      %s14 = sshll.u32 [#allocation2], 4
      %s15 = int_to_ptr.vmem [resolvable:$true] %s14
      %20 = dma.hbm_to_vmem [thread:$0]  %s0, 2048, %s15, [#allocation3], 128, 128, 8
    $region5: #{tpu_custom_call.1} parent=1 // pred_fallthru
      _
    // Predicated region
    $region6: #{tpu_custom_call.1} parent=1 // pred_check
      _
    $region7: #{tpu_custom_call.1} parent=1 // pred_check_branch
      %22 = sbr.rel (0) target = $region9
    $region8: #{tpu_custom_call.1} parent=1 // pred_region
      _
    $region9: #{tpu_custom_call.1} parent=1 // pred_fallthru
      _
    // Predicated region
    $region10: #{tpu_custom_call.1} parent=1 // pred_check
      _
    $region11: #{tpu_custom_call.1} parent=1 // pred_check_branch
      %24 = sbr.rel (0) target = $region13
    $region12: #{tpu_custom_call.1} parent=1 // pred_region
      %25 = dma.done [#allocation3], 2048
    $region13: #{tpu_custom_call.1} parent=1 // pred_fallthru
      _
    %v27 = vld [vmem:[#allocation2] sm:$0xff]
    %v28 = vld [vmem:[#allocation2 + $0x8] sm:$0xff]
    %v29 = vld [vmem:[#allocation2 + $0x10] sm:$0xff]
    %v30 = vld [vmem:[#allocation2 + $0x18] sm:$0xff]
    %v31 = vld [vmem:[#allocation2 + $0x20] sm:$0xff]
    %v32 = vld [vmem:[#allocation2 + $0x28] sm:$0xff]
    %v33 = vld [vmem:[#allocation2 + $0x30] sm:$0xff]
    %v34 = vld [vmem:[#allocation2 + $0x38] sm:$0xff]
    %v35 = vld [vmem:[#allocation2 + $0x40] sm:$0xff]
    %v36 = vld [vmem:[#allocation2 + $0x48] sm:$0xff]
    %v37 = vld [vmem:[#allocation2 + $0x50] sm:$0xff]
    %v38 = vld [vmem:[#allocation2 + $0x58] sm:$0xff]
    %v39 = vld [vmem:[#allocation2 + $0x60] sm:$0xff]
    %v40 = vld [vmem:[#allocation2 + $0x68] sm:$0xff]
    %v41 = vld [vmem:[#allocation2 + $0x70] sm:$0xff]
    %v42 = vld [vmem:[#allocation2 + $0x78] sm:$0xff]
    %v43 = vpack.c.bf16 %v28, %v27
    %v44 = vpack.c.bf16 %v30, %v29
    %v45 = vpack.c.bf16 %v32, %v31
    %v46 = vpack.c.bf16 %v34, %v33
    %v47 = vpack.c.bf16 %v36, %v35
    %v48 = vpack.c.bf16 %v38, %v37
    %v49 = vpack.c.bf16 %v40, %v39
    %v50 = vpack.c.bf16 %v42, %v41
    %v51 = vld [vmem:[%s1] sm:$0xf]
    %v52 = vld [vmem:[%s1 + $0x4] sm:$0xf]
    %v53 = vld [vmem:[%s1 + $0x8] sm:$0xf]
    %v54 = vld [vmem:[%s1 + $0xc] sm:$0xf]
    %v55 = vld [vmem:[%s1 + $0x10] sm:$0xf]
    %v56 = vld [vmem:[%s1 + $0x14] sm:$0xf]
    %v57 = vld [vmem:[%s1 + $0x18] sm:$0xf]
    %v58 = vld [vmem:[%s1 + $0x1c] sm:$0xf]
    %v59 = vld [vmem:[%s1 + $0x20] sm:$0xf]
    %v60 = vld [vmem:[%s1 + $0x24] sm:$0xf]
    %v61 = vld [vmem:[%s1 + $0x28] sm:$0xf]
    %v62 = vld [vmem:[%s1 + $0x2c] sm:$0xf]
    %v63 = vld [vmem:[%s1 + $0x30] sm:$0xf]
    %v64 = vld [vmem:[%s1 + $0x34] sm:$0xf]
    %v65 = vld [vmem:[%s1 + $0x38] sm:$0xf]
    %v66 = vld [vmem:[%s1 + $0x3c] sm:$0xf]
    %v83 = vunpack.c.l.b16 %v51
    %v84 = vunpack.c.l.b16 %v52
    %v85 = vunpack.c.l.b16 %v53
    %v86 = vunpack.c.l.b16 %v54
    %v87 = vunpack.c.l.b16 %v55
    %v88 = vunpack.c.l.b16 %v56
    %v89 = vunpack.c.l.b16 %v57
    %v90 = vunpack.c.l.b16 %v58
    %v91 = vunpack.c.l.b16 %v59
    %v92 = vunpack.c.l.b16 %v60
    %v93 = vunpack.c.l.b16 %v61
    %v94 = vunpack.c.l.b16 %v62
    %v95 = vunpack.c.l.b16 %v63
    %v96 = vunpack.c.l.b16 %v64
    %v97 = vunpack.c.l.b16 %v65
    %v98 = vunpack.c.l.b16 %v66
    %v99 = vpack.c.b16 %v84, %v83
    %v100 = vpack.c.b16 %v86, %v85
    %v101 = vpack.c.b16 %v88, %v87
    %v102 = vpack.c.b16 %v90, %v89
    %v103 = vpack.c.b16 %v92, %v91
    %v104 = vpack.c.b16 %v94, %v93
    %v105 = vpack.c.b16 %v96, %v95
    %v106 = vpack.c.b16 %v98, %v97
    %115 = vmatprep.subr.bf16.mxu0 0
    %116 = vmatpush1.bf16.msra.mxu0 %v99
    %117 = vmatprep.subr.bf16.mxu0 0
    %118 = vmatpush1.bf16.msra.mxu0 %v100
    %119 = vmatprep.subr.bf16.mxu0 0
    %120 = vmatpush1.bf16.msra.mxu0 %v101
    %121 = vmatprep.subr.bf16.mxu0 0
    %122 = vmatpush1.bf16.msra.mxu0 %v102
    %123 = vmatprep.subr.bf16.mxu0 0
    %124 = vmatpush1.bf16.msra.mxu0 %v103
    %125 = vmatprep.subr.bf16.mxu0 0
    %126 = vmatpush1.bf16.msra.mxu0 %v104
    %127 = vmatprep.subr.bf16.mxu0 0
    %128 = vmatpush1.bf16.msra.mxu0 %v105
    %129 = vmatprep.subr.bf16.mxu0 0
    %130 = vmatpush1.bf16.msra.mxu0 %v106
    %131 = vmatprep.subr.bf16.mxu0 0
    %132 = vmatpush1.bf16.msra.mxu0 0
    %133 = vmatprep.subr.bf16.mxu0 0
    %134 = vmatpush1.bf16.msra.mxu0 0
    %135 = vmatprep.subr.bf16.mxu0 0
    %136 = vmatpush1.bf16.msra.mxu0 0
    %137 = vmatprep.subr.bf16.mxu0 0
    %138 = vmatpush1.bf16.msra.mxu0 0
    %139 = vmatprep.subr.bf16.mxu0 0
    %140 = vmatpush1.bf16.msra.mxu0 0
    %141 = vmatprep.subr.bf16.mxu0 0
    %142 = vmatpush1.bf16.msra.mxu0 0
    %143 = vmatprep.subr.bf16.mxu0 0
    %144 = vmatpush1.bf16.msra.mxu0 0
    %145 = vmatprep.subr.bf16.mxu0 0
    %146 = vmatpush1.bf16.msra.mxu0 0
    %147 = vmatprep.mubr.bf16.mxu0 0
    %148 = vmatmul.mubr.bf16.gmra.mrb[0].mxu0 %v43
    %v149 = vpop.f32.mrb[0].mxu0
    %v150 = vadd.f32 0.0, %v149
    %v151 = vpop.f32.mrb[0].mxu0
    %v152 = vpop.f32.mrb[0].mxu0
    %v153 = vadd.f32 0.0, %v152
    %v154 = vpop.f32.mrb[0].mxu0
    %155 = vmatprep.mubr.bf16.mxu0 0
    %156 = vmatmul.mubr.bf16.gmra.mrb[0].mxu0 %v44
    %v157 = vpop.f32.mrb[0].mxu0
    %v158 = vadd.f32 0.0, %v157
    %v159 = vpop.f32.mrb[0].mxu0
    %v160 = vpop.f32.mrb[0].mxu0
    %v161 = vadd.f32 0.0, %v160
    %v162 = vpop.f32.mrb[0].mxu0
    %163 = vmatprep.mubr.bf16.mxu0 0
    %164 = vmatmul.mubr.bf16.gmra.mrb[0].mxu0 %v45
    %v165 = vpop.f32.mrb[0].mxu0
    %v166 = vadd.f32 0.0, %v165
    %v167 = vpop.f32.mrb[0].mxu0
    %v168 = vpop.f32.mrb[0].mxu0
    %v169 = vadd.f32 0.0, %v168
    %v170 = vpop.f32.mrb[0].mxu0
    %171 = vmatprep.mubr.bf16.mxu0 0
    %172 = vmatmul.mubr.bf16.gmra.mrb[0].mxu0 %v46
    %v173 = vpop.f32.mrb[0].mxu0
    %v174 = vadd.f32 0.0, %v173
    %v175 = vpop.f32.mrb[0].mxu0
    %v176 = vpop.f32.mrb[0].mxu0
    %v177 = vadd.f32 0.0, %v176
    %v178 = vpop.f32.mrb[0].mxu0
    %179 = vmatprep.mubr.bf16.mxu0 0
    %180 = vmatmul.mubr.bf16.gmra.mrb[0].mxu0 %v47
    %v181 = vpop.f32.mrb[0].mxu0
    %v182 = vadd.f32 0.0, %v181
    %v183 = vpop.f32.mrb[0].mxu0
    %v184 = vpop.f32.mrb[0].mxu0
    %v185 = vadd.f32 0.0, %v184
    %v186 = vpop.f32.mrb[0].mxu0
    %187 = vmatprep.mubr.bf16.mxu0 0
    %188 = vmatmul.mubr.bf16.gmra.mrb[0].mxu0 %v48
    %v189 = vpop.f32.mrb[0].mxu0
    %v190 = vadd.f32 0.0, %v189
    %v191 = vpop.f32.mrb[0].mxu0
    %v192 = vpop.f32.mrb[0].mxu0
    %v193 = vadd.f32 0.0, %v192
    %v194 = vpop.f32.mrb[0].mxu0
    %195 = vmatprep.mubr.bf16.mxu0 0
    %196 = vmatmul.mubr.bf16.gmra.mrb[0].mxu0 %v49
    %v197 = vpop.f32.mrb[0].mxu0
    %v198 = vadd.f32 0.0, %v197
    %v199 = vpop.f32.mrb[0].mxu0
    %v200 = vpop.f32.mrb[0].mxu0
    %v201 = vadd.f32 0.0, %v200
    %v202 = vpop.f32.mrb[0].mxu0
    %203 = vmatprep.mubr.bf16.mxu0 0
    %204 = vmatmul.mubr.bf16.gmra.mrb[0].mxu0 %v50
    %v205 = vpop.f32.mrb[0].mxu0
    %v206 = vadd.f32 0.0, %v205
    %v207 = vpop.f32.mrb[0].mxu0
    %v208 = vpop.f32.mrb[0].mxu0
    %v209 = vadd.f32 0.0, %v208
    %v210 = vpop.f32.mrb[0].mxu0
    %211 = vdwg.mxu0
    %212 = vst [vmem:[#allocation5] sm:$0xff] %v150
    %213 = vst [vmem:[#allocation5 + $0x8] sm:$0xff] %v153
    %214 = vst [vmem:[#allocation5 + $0x10] sm:$0xff] %v158
    %215 = vst [vmem:[#allocation5 + $0x18] sm:$0xff] %v161
    %216 = vst [vmem:[#allocation5 + $0x20] sm:$0xff] %v166
    %217 = vst [vmem:[#allocation5 + $0x28] sm:$0xff] %v169
    %218 = vst [vmem:[#allocation5 + $0x30] sm:$0xff] %v174
    %219 = vst [vmem:[#allocation5 + $0x38] sm:$0xff] %v177
    %220 = vst [vmem:[#allocation5 + $0x40] sm:$0xff] %v182
    %221 = vst [vmem:[#allocation5 + $0x48] sm:$0xff] %v185
    %222 = vst [vmem:[#allocation5 + $0x50] sm:$0xff] %v190
    %223 = vst [vmem:[#allocation5 + $0x58] sm:$0xff] %v193
    %224 = vst [vmem:[#allocation5 + $0x60] sm:$0xff] %v198
    %225 = vst [vmem:[#allocation5 + $0x68] sm:$0xff] %v201
    %226 = vst [vmem:[#allocation5 + $0x70] sm:$0xff] %v206
    %227 = vst [vmem:[#allocation5 + $0x78] sm:$0xff] %v209
    // Predicated region
    $region14: #{tpu_custom_call.1} parent=1 // pred_check
      _
    $region15: #{tpu_custom_call.1} parent=1 // pred_check_branch
      %229 = sbr.rel (0) target = $region17
    $region16: #{tpu_custom_call.1} parent=1 // pred_region
      %s231 = ssub.s32 2048, 2048
      %232 = vsyncadd [#allocation4], %s231
      %s233 = sshll.u32 [#allocation5], 4
      %s234 = int_to_ptr.vmem [resolvable:$true] %s233
      %239 = dma.vmem_to_hbm [thread:$0]  %s234, 2048, %s2, [#allocation4], 128, 128, 8
    $region17: #{tpu_custom_call.1} parent=1 // pred_fallthru
      _
    // Predicated region
    $region18: #{tpu_custom_call.1} parent=1 // pred_check
      _
    $region19: #{tpu_custom_call.1} parent=1 // pred_check_branch
      %241 = sbr.rel (0) target = $region21
    $region20: #{tpu_custom_call.1} parent=1 // pred_region
      %242 = dma.done [#allocation4], 2048
    $region21: #{tpu_custom_call.1} parent=1 // pred_fallthru
      _
    %243 = vsyncpa [#allocation3], 1
    %244 = vsyncpa [#allocation4], 1

</llo_original>
